<compile_context>
chip_gen: v6e
topology: v6e:2x2x1
jax: 0.10.0
libtpu: 0.0.40
codegen_flags: <defaults>
</compile_context>

<pallas_src>
import math
import functools

import jax
import jax.numpy as jnp
from jax.experimental import pallas as pl
from jax.experimental.pallas import tpu as pltpu


# ----------------------------------------------------------------------------
# Reference pe buffer (plain JAX) — used only for the correctness check in main.
# ----------------------------------------------------------------------------
def make_positional_encoding_buffer(max_len: int, d_model: int) -> jnp.ndarray:
    """Builds `pe` exactly as PositionalEncoding.__init__ does: [max_len, 1, d_model]."""
    position = jnp.arange(0, max_len, dtype=jnp.float32)[:, None]
    div_term = jnp.exp(
        jnp.arange(0, d_model, 2, dtype=jnp.float32) * (-math.log(10000.0) / d_model)
    )
    pe = jnp.zeros((max_len, d_model), dtype=jnp.float32)
    pe = pe.at[:, 0::2].set(jnp.sin(position * div_term))
    pe = pe.at[:, 1::2].set(jnp.cos(position * div_term))
    return pe[:, None, :]


def _make_flat_pe_tables(batch: int, d_model: int):
    """Per-flat-column tables for the (S, B*D) layout.

    pe[s, b*D + d] = sin(s * inv_freq[d] + phase[d]) with
      inv_freq[d] = exp(-(2*(d//2)) * ln(10000)/D)   (same for the sin/cos pair)
      phase[d]    = (d % 2) * pi/2                    (sin for even d, cos for odd d)
    """
    d = jnp.arange(d_model, dtype=jnp.int32)
    exponent = (2 * (d // 2)).astype(jnp.float32)
    inv_freq_d = jnp.exp(exponent * (-math.log(10000.0) / d_model))
    phase_d = (d % 2).astype(jnp.float32) * (math.pi / 2.0)
    inv_freq = jnp.tile(inv_freq_d, (batch,))[None, :]   # (1, B*D)
    phase = jnp.tile(phase_d, (batch,))[None, :]         # (1, B*D)
    return inv_freq.astype(jnp.float32), phase.astype(jnp.float32)


# ----------------------------------------------------------------------------
# Pallas kernels
# ----------------------------------------------------------------------------
def _hash_u32(x):
    """splitmix32-style avalanche; plain VPU int ops (portable, no pltpu.prng_*)."""
    x = x ^ (x >> jnp.uint32(16))
    x = x * jnp.uint32(0x7FEB352D)
    x = x ^ (x >> jnp.uint32(15))
    x = x * jnp.uint32(0x846CA68B)
    x = x ^ (x >> jnp.uint32(16))
    return x


def _pe_rows(x_ref, inv_freq_ref, phase_ref):
    """Positional-encoding tile, computed in-kernel (EUP sin; no pe DMA traffic)."""
    ts, _ = x_ref.shape
    row0 = pl.program_id(0) * ts
    pos = (row0 + jax.lax.broadcasted_iota(jnp.int32, (ts, 1), 0)).astype(jnp.float32)
    return jnp.sin(pos * inv_freq_ref[...] + phase_ref[...])        # (ts, C)


def _pe_add_dropout_kernel(seed_ref, x_ref, inv_freq_ref, phase_ref, o_ref,
                           *, dropout_p: float, scale: float):
    ts, C = x_ref.shape
    y = x_ref[...].astype(jnp.float32) + _pe_rows(x_ref, inv_freq_ref, phase_ref)

    # Stateless counter-based PRNG keyed on the GLOBAL element index + seed, so
    # tiles are independent ("parallel" grid) and seed/tile mixing is non-additive.
    row0 = pl.program_id(0) * ts
    row_u = (row0 + jax.lax.broadcasted_iota(jnp.int32, (ts, C), 0)).astype(jnp.uint32)
    col_u = jax.lax.broadcasted_iota(jnp.int32, (ts, C), 1).astype(jnp.uint32)
    seed_u = seed_ref[0].astype(jnp.uint32)
    h = _hash_u32(seed_u ^ (row_u * jnp.uint32(0x9E3779B1)))
    h = _hash_u32(h ^ (col_u * jnp.uint32(0x85EBCA77)))
    # top 24 bits -> exact f32 uniform in [0, 1)
    u = (h >> jnp.uint32(8)).astype(jnp.int32).astype(jnp.float32) * jnp.float32(1.0 / (1 << 24))
    keep = (u >= jnp.float32(dropout_p)).astype(jnp.float32)
    o_ref[...] = (y * (keep * jnp.float32(scale))).astype(o_ref.dtype)


def _pe_add_kernel(seed_ref, x_ref, inv_freq_ref, phase_ref, o_ref):
    y = x_ref[...].astype(jnp.float32) + _pe_rows(x_ref, inv_freq_ref, phase_ref)
    o_ref[...] = y.astype(o_ref.dtype)


# ----------------------------------------------------------------------------
# Wrapper
# ----------------------------------------------------------------------------
def positional_encoding_forward(
    x: jnp.ndarray,
    *,
    dropout_p: float = 0.1,
    training: bool = True,
    seed: int = 0,
    target_block_bytes: int = 2 * 1024 * 1024,
    vmem_limit_bytes: int = 32 * 1024 * 1024,
) -> jnp.ndarray:
    """x: [S, B, D] -> dropout(x + pe[:S]), matching PositionalEncoding.forward."""
    S, B, D = x.shape
    C = B * D

    # nn.Dropout(p>=1) zeroes everything; handle here (avoids inf scale in-kernel).
    if training and dropout_p >= 1.0:
        return jnp.zeros_like(x)

    # Lane-dense 2D slab: (S, B, D) -> (S, B*D) is a free, contiguous reshape.
    x2 = x.reshape(S, C)
    inv_freq, phase = _make_flat_pe_tables(B, D)

    # Tile the sequence axis so each x/out block is ~target_block_bytes; BlockSpec
    # double-buffers, so peak VMEM ~= 2*(x_tile + out_tile) + tiny tables.
    bytes_per_row = C * x.dtype.itemsize
    ts = max(1, min(S, target_block_bytes // max(1, bytes_per_row)))
    if ts < S:
        ts = max(8, (ts // 8) * 8)          # sublane-aligned when actually tiling
    grid = (pl.cdiv(S, ts),)

    if training and dropout_p > 0.0:
        kernel = functools.partial(
            _pe_add_dropout_kernel,
            dropout_p=float(dropout_p),
            scale=1.0 / (1.0 - float(dropout_p)),
        )
    else:
        kernel = _pe_add_kernel

    seed_arr = jnp.array([seed], dtype=jnp.int32)

    grid_spec = pltpu.PrefetchScalarGridSpec(
        num_scalar_prefetch=1,                                   # seed lands in SMEM
        grid=grid,
        in_specs=[
            pl.BlockSpec((ts, C), lambda i, seed_ref: (i, 0)),   # x tile
            pl.BlockSpec((1, C), lambda i, seed_ref: (0, 0)),    # inv_freq (resident)
            pl.BlockSpec((1, C), lambda i, seed_ref: (0, 0)),    # phase    (resident)
        ],
        out_specs=pl.BlockSpec((ts, C), lambda i, seed_ref: (i, 0)),
    )

    out2 = pl.pallas_call(
        kernel,
        out_shape=jax.ShapeDtypeStruct((S, C), x.dtype),
        grid_spec=grid_spec,
        compiler_params=pltpu.CompilerParams(
            # Tiles are fully independent -> shard across TensorCores on v7x.
            dimension_semantics=("parallel",),
            vmem_limit_bytes=vmem_limit_bytes,
        ),
        # NOTE: if a v5e profile still shows exposed DMA, add
        # pipeline_mode=pl.Buffered(3) on the x BlockSpec (VMEM headroom permitting).
    )(seed_arr, x2, inv_freq, phase)

    return out2.reshape(S, B, D)


# ----------------------------------------------------------------------------
# Demo / smoke test
# ----------------------------------------------------------------------------
if __name__ == "__main__":
    seq_len, batch, d_model = 8, 2, 32
    max_len = 5000
    dropout_p = 0.1

    key = jax.random.PRNGKey(0)
    x = jax.random.normal(key, (seq_len, batch, d_model), dtype=jnp.float32)

    # Training-mode forward (nn.Module default: training=True).
    out_train = positional_encoding_forward(x, dropout_p=dropout_p, training=True, seed=0)
    out_train = jax.block_until_ready(out_train)

    # Eval-mode forward (dropout == identity): check against the PyTorch-style pe buffer.
    out_eval = positional_encoding_forward(x, dropout_p=dropout_p, training=False)
    out_eval = jax.block_until_ready(out_eval)

    pe = make_positional_encoding_buffer(max_len, d_model)          # [max_len, 1, D]
    ref = x + pe[:seq_len]

    assert out_train.shape == (seq_len, batch, d_model)
    assert jnp.allclose(out_eval, ref, atol=2e-3, rtol=1e-3), "eval-mode mismatch"

    # Training mode: every element is either dropped (0) or equal to ref / (1 - p).
    scale = 1.0 / (1.0 - dropout_p)
    dropped = out_train == 0.0
    assert jnp.allclose(
        jnp.where(dropped, 0.0, out_train),
        jnp.where(dropped, 0.0, ref * scale),
        atol=2e-3, rtol=1e-3,
    ), "training-mode kept values mismatch"
    drop_frac = float(jnp.mean(dropped.astype(jnp.float32)))
    assert 0.0 < drop_frac < 0.5, "implausible dropout rate"

    print("KERNEL_OK")
</pallas_src>

<mosaic_0001>
module attributes {stable_mosaic.version = 11 : i64} {
  func.func @_pe_add_dropout_kernel(%arg0: i32, %arg1: memref<1xi32, #tpu.memory_space<smem>>, %arg2: memref<8x64xf32, #tpu.memory_space<vmem>>, %arg3: memref<1x64xf32, #tpu.memory_space<vmem>>, %arg4: memref<1x64xf32, #tpu.memory_space<vmem>>, %arg5: memref<8x64xf32, #tpu.memory_space<vmem>>) attributes {dimension_semantics = [#tpu.dimension_semantics<parallel>], iteration_bounds = array<i64: 1>, scalar_prefetch = 1 : i64, scratch_operands = 0 : i64, tpu.core_type = #tpu.core_type<tc>, window_params = [{transform_indices = @transform_0, window_bounds = array<i64: 8, 64>}, {pipeline_mode = #tpu.pipeline_mode<synchronous>, transform_indices = @transform_1, window_bounds = array<i64: 1, 64>}, {pipeline_mode = #tpu.pipeline_mode<synchronous>, transform_indices = @transform_2, window_bounds = array<i64: 1, 64>}, {transform_indices = @transform_3, window_bounds = array<i64: 8, 64>}]} {
    %c0 = arith.constant 0 : index
    %c0_0 = arith.constant 0 : index
    %0 = vector.load %arg2[%c0, %c0_0] : memref<8x64xf32, #tpu.memory_space<vmem>>, vector<8x64xf32>
    %c8_i32 = arith.constant 8 : i32
    %1 = arith.muli %arg0, %c8_i32 : i32
    %2 = tpu.iota {dimensions = array<i32: 0>} : vector<8x1xi32>
    %3 = vector.broadcast %1 : i32 to vector<8x1xi32>
    %4 = arith.addi %3, %2 : vector<8x1xi32>
    %5 = arith.sitofp %4 : vector<8x1xi32> to vector<8x1xf32>
    %c0_1 = arith.constant 0 : index
    %c0_2 = arith.constant 0 : index
    %6 = vector.load %arg3[%c0_1, %c0_2] : memref<1x64xf32, #tpu.memory_space<vmem>>, vector<1x64xf32>
    %7 = vector.broadcast %5 : vector<8x1xf32> to vector<8x64xf32>
    %8 = vector.broadcast %6 : vector<1x64xf32> to vector<8x64xf32>
    %9 = arith.mulf %7, %8 : vector<8x64xf32>
    %c0_3 = arith.constant 0 : index
    %c0_4 = arith.constant 0 : index
    %10 = vector.load %arg4[%c0_3, %c0_4] : memref<1x64xf32, #tpu.memory_space<vmem>>, vector<1x64xf32>
    %11 = vector.broadcast %10 : vector<1x64xf32> to vector<8x64xf32>
    %12 = arith.addf %9, %11 : vector<8x64xf32>
    %13 = math.sin %12 : vector<8x64xf32>
    %14 = arith.addf %0, %13 : vector<8x64xf32>
    %c8_i32_5 = arith.constant 8 : i32
    %15 = arith.muli %arg0, %c8_i32_5 : i32
    %16 = tpu.iota {dimensions = array<i32: 0>} : vector<8x64xi32>
    %17 = vector.broadcast %15 : i32 to vector<8x64xi32>
    %18 = arith.addi %17, %16 : vector<8x64xi32>
    %19 = tpu.iota {dimensions = array<i32: 1>} : vector<8x64xi32>
    %c0_6 = arith.constant 0 : index
    %20 = memref.load %arg1[%c0_6] : memref<1xi32, #tpu.memory_space<smem>>
    %c-1640531535_i32 = arith.constant -1640531535 : i32
    %21 = vector.broadcast %c-1640531535_i32 : i32 to vector<8x64xi32>
    %22 = arith.muli %18, %21 : vector<8x64xi32>
    %23 = vector.broadcast %20 : i32 to vector<8x64xi32>
    %24 = arith.xori %23, %22 : vector<8x64xi32>
    %c16_i32 = arith.constant 16 : i32
    %25 = vector.broadcast %c16_i32 : i32 to vector<8x64xi32>
    %26 = arith.shrui %24, %25 : vector<8x64xi32>
    %27 = arith.xori %24, %26 : vector<8x64xi32>
    %c2146121005_i32 = arith.constant 2146121005 : i32
    %28 = vector.broadcast %c2146121005_i32 : i32 to vector<8x64xi32>
    %29 = arith.muli %27, %28 : vector<8x64xi32>
    %c15_i32 = arith.constant 15 : i32
    %30 = vector.broadcast %c15_i32 : i32 to vector<8x64xi32>
    %31 = arith.shrui %29, %30 : vector<8x64xi32>
    %32 = arith.xori %29, %31 : vector<8x64xi32>
    %c-2073254261_i32 = arith.constant -2073254261 : i32
    %33 = vector.broadcast %c-2073254261_i32 : i32 to vector<8x64xi32>
    %34 = arith.muli %32, %33 : vector<8x64xi32>
    %c16_i32_7 = arith.constant 16 : i32
    %35 = vector.broadcast %c16_i32_7 : i32 to vector<8x64xi32>
    %36 = arith.shrui %34, %35 : vector<8x64xi32>
    %37 = arith.xori %34, %36 : vector<8x64xi32>
    %c-2048144777_i32 = arith.constant -2048144777 : i32
    %38 = vector.broadcast %c-2048144777_i32 : i32 to vector<8x64xi32>
    %39 = arith.muli %19, %38 : vector<8x64xi32>
    %40 = arith.xori %37, %39 : vector<8x64xi32>
    %c16_i32_8 = arith.constant 16 : i32
    %41 = vector.broadcast %c16_i32_8 : i32 to vector<8x64xi32>
    %42 = arith.shrui %40, %41 : vector<8x64xi32>
    %43 = arith.xori %40, %42 : vector<8x64xi32>
    %c2146121005_i32_9 = arith.constant 2146121005 : i32
    %44 = vector.broadcast %c2146121005_i32_9 : i32 to vector<8x64xi32>
    %45 = arith.muli %43, %44 : vector<8x64xi32>
    %c15_i32_10 = arith.constant 15 : i32
    %46 = vector.broadcast %c15_i32_10 : i32 to vector<8x64xi32>
    %47 = arith.shrui %45, %46 : vector<8x64xi32>
    %48 = arith.xori %45, %47 : vector<8x64xi32>
    %c-2073254261_i32_11 = arith.constant -2073254261 : i32
    %49 = vector.broadcast %c-2073254261_i32_11 : i32 to vector<8x64xi32>
    %50 = arith.muli %48, %49 : vector<8x64xi32>
    %c16_i32_12 = arith.constant 16 : i32
    %51 = vector.broadcast %c16_i32_12 : i32 to vector<8x64xi32>
    %52 = arith.shrui %50, %51 : vector<8x64xi32>
    %53 = arith.xori %50, %52 : vector<8x64xi32>
    %c8_i32_13 = arith.constant 8 : i32
    %54 = vector.broadcast %c8_i32_13 : i32 to vector<8x64xi32>
    %55 = arith.shrui %53, %54 : vector<8x64xi32>
    %56 = arith.sitofp %55 : vector<8x64xi32> to vector<8x64xf32>
    %cst = arith.constant 5.96046448E-8 : f32
    %57 = vector.broadcast %cst : f32 to vector<8x64xf32>
    %58 = arith.mulf %56, %57 : vector<8x64xf32>
    %cst_14 = arith.constant 1.000000e-01 : f32
    %59 = vector.broadcast %cst_14 : f32 to vector<8x64xf32>
    %60 = arith.cmpf oge, %58, %59 : vector<8x64xf32>
    %61 = arith.extui %60 : vector<8x64xi1> to vector<8x64xi32>
    %62 = arith.sitofp %61 : vector<8x64xi32> to vector<8x64xf32>
    %cst_15 = arith.constant 1.11111116 : f32
    %63 = vector.broadcast %cst_15 : f32 to vector<8x64xf32>
    %64 = arith.mulf %62, %63 : vector<8x64xf32>
    %65 = arith.mulf %14, %64 : vector<8x64xf32>
    %c0_16 = arith.constant 0 : index
    %c0_17 = arith.constant 0 : index
    %66 = vector.load %arg5[%c0_16, %c0_17] : memref<8x64xf32, #tpu.memory_space<vmem>>, vector<8x64xf32>
    tpu.vector_store %arg5[%c0_16, %c0_17], %65 {strides = array<i32>} : memref<8x64xf32, #tpu.memory_space<vmem>>, vector<8x64xf32>,
    return
  }
  func.func @transform_0(%arg0: i32, %arg1: memref<1xi32, #tpu.memory_space<smem>>) -> (i32, i32) {
    %c0_i32 = arith.constant 0 : i32
    %c0_i32_0 = arith.constant 0 : i32
    return %arg0, %c0_i32 : i32, i32
  }
  func.func @transform_1(%arg0: i32, %arg1: memref<1xi32, #tpu.memory_space<smem>>) -> (i32, i32) {
    %c0_i32 = arith.constant 0 : i32
    %c0_i32_0 = arith.constant 0 : i32
    %c0_i32_1 = arith.constant 0 : i32
    return %c0_i32, %c0_i32_0 : i32, i32
  }
  func.func @transform_2(%arg0: i32, %arg1: memref<1xi32, #tpu.memory_space<smem>>) -> (i32, i32) {
    %c0_i32 = arith.constant 0 : i32
    %c0_i32_0 = arith.constant 0 : i32
    %c0_i32_1 = arith.constant 0 : i32
    return %c0_i32, %c0_i32_0 : i32, i32
  }
  func.func @transform_3(%arg0: i32, %arg1: memref<1xi32, #tpu.memory_space<smem>>) -> (i32, i32) {
    %c0_i32 = arith.constant 0 : i32
    %c0_i32_0 = arith.constant 0 : i32
    return %arg0, %c0_i32 : i32, i32
  }
}

</mosaic_0001>

<llo_original>
// kernel: tpu_custom_call.1
$region0: #{tpu_custom_call.1}
  #allocation0 [shape = 'u32[]', space=smem, size = 0x4, offset = 0x4, fixed_abs, tag = 'smem constant byte address 0x4 - core index']
  #allocation1 [shape = 'u32[144,128]{1,0:T(1,128)}', space=vmem, size = 0x12000, scoped, tag = 'internal scratch']
  #allocation2 [shape = 's32[1]{0}', space=sflag, size = 0x4, scoped, tag = 'scoped memory for tpu_custom_call.1']
  #allocation3 [shape = 's32[1]{0:T(128)S(6)}', space=smem, size = 0x200, scoped, tag = 'prefetched SMEM operand 0']
  %s0 = inlined_call_operand.<no memory space> [shape: s32[1], index: 0, kind: input, shape index: {}]
  %s1 = inlined_call_operand.hbm [shape: f32[8,64], index: 1, kind: input, shape index: {}]
  %s2 = inlined_call_operand.vmem [shape: f32[1,64], index: 2, kind: input, shape index: {}]
  %s3 = inlined_call_operand.vmem [shape: f32[1,64], index: 3, kind: input, shape index: {}]
  %s4 = inlined_call_operand.hbm [shape: f32[8,64], index: 4, kind: output, shape index: {}]
  %s5 = sld [smem:[#allocation0]]
  $region26: #{tpu_custom_call.1} parent=0
    _
  %s7 = ssub.s32 1, %s5
  %s8 = scalar_select 0, %s7, %s5
  %9 = sst [smem:[#allocation3]] %s0
  $region1: #{tpu_custom_call.1} parent=0
    #allocation4 [shape = 'u8[4096]{0}', space=vmem, size = 0x1000, scoped, tag = 'input window, operand 1, single buffered']
    #allocation5 [shape = 's32[1]{0}', space=sflag, size = 0x4, scoped, tag = 'scoped memory for tpu_custom_call.1']
    #allocation6 [shape = 's32[1]{0}', space=sflag, size = 0x4, scoped, tag = 'scoped memory for tpu_custom_call.1']
    #allocation7 [shape = 'u8[4096]{0}', space=vmem, size = 0x1000, scoped, tag = 'output window, operand 0, single buffered']
    %10 = vsyncpa [#allocation5], 0
    %11 = vsyncpa [#allocation6], 0
    // Predicated region
    $region2: #{tpu_custom_call.1} parent=1 // pred_check
      _
    $region3: #{tpu_custom_call.1} parent=1 // pred_check_branch
      %13 = sbr.rel (0) target = $region5
    $region4: #{tpu_custom_call.1} parent=1 // pred_region
      %s15 = ssub.s32 128, 128
      %16 = vsyncadd [#allocation5], %s15
      %s18 = sshll.u32 [#allocation4], 4
      %s19 = int_to_ptr.vmem [resolvable:$true] %s18
      %21 = dma.hbm_to_vmem [thread:$0]  %s1, 128, %s19, [#allocation5]
    $region5: #{tpu_custom_call.1} parent=1 // pred_fallthru
      _
    // Predicated region
    $region6: #{tpu_custom_call.1} parent=1 // pred_check
      _
    $region7: #{tpu_custom_call.1} parent=1 // pred_check_branch
      %23 = sbr.rel (0) target = $region9
    $region8: #{tpu_custom_call.1} parent=1 // pred_region
      _
    $region9: #{tpu_custom_call.1} parent=1 // pred_fallthru
      _
    // Predicated region
    $region10: #{tpu_custom_call.1} parent=1 // pred_check
      _
    $region11: #{tpu_custom_call.1} parent=1 // pred_check_branch
      %25 = sbr.rel (0) target = $region13
    $region12: #{tpu_custom_call.1} parent=1 // pred_region
      _
    $region13: #{tpu_custom_call.1} parent=1 // pred_fallthru
      _
    // Predicated region
    $region14: #{tpu_custom_call.1} parent=1 // pred_check
      _
    $region15: #{tpu_custom_call.1} parent=1 // pred_check_branch
      %27 = sbr.rel (0) target = $region17
    $region16: #{tpu_custom_call.1} parent=1 // pred_region
      %28 = dma.done [#allocation5], 128
    $region17: #{tpu_custom_call.1} parent=1 // pred_fallthru
      _
    %v29 = vld [vmem:[#allocation4] sm:$0xff]
    %s30 = smul.u32 0, 8
    %v31 = vlaneseq
    %v32 = vshrl.u32 %v31, 7
    %v33 = vstv %s30
    %v34 = vadd.s32 %v33, %v32
    %v35 = vcvt.s32.f32 %v34
    %v36 = vld [vmem:[%s2] sm:$0x1]
    %v38 = vlaneseq
    %v39 = vshrl.u32 %v38, 7
    %v40 = vsub.s32 0, %v39
    %v41 = vrot.slane %v36, %v40
    %v43 = vmul.f32 %v35, %v41
    %v44 = vld [vmem:[%s3] sm:$0x1]
    %v46 = vlaneseq
    %v47 = vshrl.u32 %v46, 7
    %v48 = vsub.s32 0, %v47
    %v49 = vrot.slane %v44, %v48
    %v51 = vadd.f32 %v43, %v49
    %v52 = vand.u32 2147483647, %v51
    %vm53 = vcmp.le.f32.partialorder %v52, 0.7853982
    %vm54 = vcmp.lt.s32.totalorder %v51, 0
    %v55 = vand.u32 %v51, 2139095040
    %v56 = vshrl.u32 %v55, 23
    %v57 = vsub.s32 %v56, 127
    %v58 = vand.u32 2147483647, %v51
    %v59 = vand.u32 %v58, 8388607
    %v60 = vor.u32 %v59, 8388608
    %v61 = vsub.s32 0, %v60
    %v62 = vadd.s32 %v57, 1
    %vm63 = vcmp.gt.s32.totalorder %v62, 0
    %v64 = vsel %vm63, %v62, 0
    %v65 = vshrl.u32 %v64, 5
    %v66 = vand.u32 %v64, 31
    %v67 = vsub.s32 32, %v66
    %v68 = vshrl.u32 683565275, %v67
    %v69 = vshll.u32 683565275, %v66
    %v70 = vshrl.u32 2475754826, %v67
    %v71 = vor.u32 %v69, %v70
    %v72 = vshll.u32 2475754826, %v66
    %v73 = vshrl.u32 2131351028, %v67
    %v74 = vor.u32 %v72, %v73
    %v75 = vshll.u32 2131351028, %v66
    %v76 = vshrl.u32 2102212464, %v67
    %v77 = vor.u32 %v75, %v76
    %v78 = vshll.u32 2102212464, %v66
    %v79 = vshrl.u32 920167782, %v67
    %v80 = vor.u32 %v78, %v79
    %v81 = vshll.u32 920167782, %v66
    %v82 = vshrl.u32 1326507024, %v67
    %v83 = vor.u32 %v81, %v82
    %vm84 = vcmp.lt.s32.totalorder %v65, 1
    %vm85 = vcmp.lt.s32.totalorder %v65, 2
    %vm86 = vcmp.lt.s32.totalorder %v65, 3
    %vm87 = vcmp.lt.s32.totalorder %v65, 4
    %v88 = vsel %vm84, %v68, %v71
    %v89 = vsel %vm87, %v77, 2102212464
    %v90 = vsel %vm86, %v74, %v89
    %v91 = vsel %vm85, %v88, %v90
    %v92 = vsel %vm84, %v71, %v74
    %v93 = vsel %vm87, %v80, 920167782
    %v94 = vsel %vm86, %v77, %v93
    %v95 = vsel %vm85, %v92, %v94
    %v96 = vsel %vm84, %v74, %v77
    %v97 = vsel %vm87, %v83, 1326507024
    %v98 = vsel %vm86, %v80, %v97
    %v99 = vsel %vm85, %v96, %v98
    %v100 = vshll.u32 %v60, 8
    %v101 = vmul.u32.u64.compose %v100, %v99
    %v102 = vextract.low.u32 %v101
    %v103 = vextract.high.u32 %v101
    %v104 = vmul.u32.u64.compose %v100, %v95
    %v105 = vextract.low.u32 %v104
    %v106 = vextract.high.u32 %v104
    %v107 = vmul.u32 %v100, %v91
    %v108 = vadd.s32 %v103, %v105
    %vm109 = vc.u32 %v103, %v105
    %v110 = vadd.s32 %v106, 1
    %v111 = vsel %vm109, %v110, %v106
    %v112 = vadd.s32 %v107, %v111
    %v113 = vadd.s32 %v112, 536870912
    %v114 = vshrl.u32 %v113, 30
    %v115 = vshll.u32 %v114, 30
    %v116 = vsub.s32 %v112, %v115
    %vm117 = vcmp.lt.s32.totalorder %v116, 0
    %v118 = vsub.s32 0, %v116
    %v119 = vsel %vm117, %v118, %v116
    %v120 = vclz %v119
    %v121 = vsub.s32 %v120, 2
    %vm122 = vcmp.gt.s32.totalorder 0, %v121
    %v123 = vsel %vm122, 0, %v121
    %v124 = vsub.s32 32, %v123
    %v125 = vshll.u32 %v116, %v123
    %v126 = vshrl.u32 %v108, %v124
    %v127 = vor.u32 %v125, %v126
    %v128 = vsub.s32 4294967266, %v123
    %v129 = vadd.s32 %v128, 127
    %v130 = vshll.u32 %v129, 23
    %v131 = vor.u32 4788187, %v130
    %v132 = vand.u32 2147483647, %v131
    %v134 = vcvt.s32.f32 %v127
    %v135 = vmul.f32 %v134, %v132
    %v136 = vxor.u32 %v135, 2147483648
    %v137 = vsel %vm54, %v136, %v135
    %v138 = vsub.s32 4, %v114
    %v139 = vsel %vm54, %v138, %v114
    %v140 = vsel %vm53, %v51, %v137
    %v141 = vsel %vm53, 0, %v139
    %v142 = vcosq.f32.pop %v140
    %v143 = vsinq.f32.pop %v140
    %vm144 = vweird.f32 %v51
    %v145 = vadd.s32 %v141, 3
    %v146 = vand.u32 %v145, 3
    %vm147 = vcmp.lt.s32.totalorder %v146, 2
    %vm148 = vcmp.eq.s32.totalorder %v146, 0
    %v149 = vxor.u32 %v143, 2147483648
    %v150 = vsel %vm148, %v142, %v149
    %vm151 = vcmp.eq.s32.totalorder %v146, 2
    %v152 = vxor.u32 %v142, 2147483648
    %v153 = vsel %vm151, %v152, %v143
    %v154 = vsel %vm147, %v150, %v153
    %v155 = vsel %vm144, nan, %v154
    %v156 = vadd.f32 %v29, %v155
    %v157 = vlaneseq
    %v158 = vand.u32 %v157, 127
    %s159 = sld [smem:[#allocation3]]
    %v160 = vmul.u32 %v34, 2654435761
    %v161 = vstv %s159
    %v162 = vxor.u32 %v161, %v160
    %v163 = vshrl.u32 %v162, 16
    %v164 = vxor.u32 %v162, %v163
    %v165 = vmul.u32 %v164, 2146121005
    %v166 = vshrl.u32 %v165, 15
    %v167 = vxor.u32 %v165, %v166
    %v168 = vmul.u32 %v167, 2221713035
    %v169 = vshrl.u32 %v168, 16
    %v170 = vxor.u32 %v168, %v169
    %v171 = vmul.u32 %v158, 2246822519
    %v172 = vxor.u32 %v170, %v171
    %v173 = vshrl.u32 %v172, 16
    %v174 = vxor.u32 %v172, %v173
    %v175 = vmul.u32 %v174, 2146121005
    %v176 = vshrl.u32 %v175, 15
    %v177 = vxor.u32 %v175, %v176
    %v178 = vmul.u32 %v177, 2221713035
    %v179 = vshrl.u32 %v178, 16
    %v180 = vxor.u32 %v178, %v179
    %v181 = vshrl.u32 %v180, 8
    %v182 = vcvt.s32.f32 %v181
    %v183 = vmul.f32 %v182, 5.9604645e-08
    %vm184 = vcmp.ge.f32.partialorder %v183, 0.1
    %v185 = vsel %vm184, 1, 0
    %v186 = vcvt.s32.f32 %v185
    %v187 = vmul.f32 %v186, 1.1111112
    %v188 = vmul.f32 %v156, %v187
    %vm189 = vcmask 523264
    %190 = vst.msk [vmem:[#allocation7] sm:$0xff] %vm189, %v188
    // Predicated region
    $region18: #{tpu_custom_call.1} parent=1 // pred_check
      _
    $region19: #{tpu_custom_call.1} parent=1 // pred_check_branch
      %192 = sbr.rel (0) target = $region21
    $region20: #{tpu_custom_call.1} parent=1 // pred_region
      %s194 = ssub.s32 128, 128
      %195 = vsyncadd [#allocation6], %s194
      %s197 = sshll.u32 [#allocation7], 4
      %s198 = int_to_ptr.vmem [resolvable:$true] %s197
      %200 = dma.vmem_to_hbm [thread:$0]  %s198, 128, %s4, [#allocation6]
    $region21: #{tpu_custom_call.1} parent=1 // pred_fallthru
      _
    // Predicated region
    $region22: #{tpu_custom_call.1} parent=1 // pred_check
      _
    $region23: #{tpu_custom_call.1} parent=1 // pred_check_branch
      %202 = sbr.rel (0) target = $region25
    $region24: #{tpu_custom_call.1} parent=1 // pred_region
      %203 = dma.done [#allocation6], 128
    $region25: #{tpu_custom_call.1} parent=1 // pred_fallthru
      _
    %204 = vsyncpa [#allocation5], 1
    %205 = vsyncpa [#allocation6], 1

</llo_original>
